<compile_context>
chip_gen: v7x
topology: tpu7x:2x2x1
jax: 0.10.0
libtpu: 0.0.40
codegen_flags: <defaults>
</compile_context>

<pallas_src>
import jax
import jax.numpy as jnp
from jax.experimental import pallas as pl
from jax.experimental.pallas import tpu as pltpu

LANE = 128


def _round_up(n, m):
    return ((n + m - 1) // m) * m


def _vmem_capacity_bytes():
    try:
        return int(pltpu.get_tpu_info().vmem_capacity_bytes)
    except Exception:
        return 64 * 1024 * 1024  # conservative fallback (v7x per-TC VMEM)


def temple_heart_kernel(x_ref, wc_ref, bc_ref, we_ref, be_ref, o_ref):
    # x_ref: (tm, Dp) input dtype  wc_ref: (Dp, Hp) MXU dtype  bc_ref: (1, Hp) f32
    # we_ref: (Hp, Dp) MXU dtype   be_ref: (1, Dp) f32          o_ref: (tm, Dp)

    # In-kernel cast to the MXU dtype (VPU op, hidden under the MXU); avoids a
    # wrapper-side pad+astype HBM pass over x.
    x = x_ref[...].astype(wc_ref.dtype)

    # compress: x @ Wc^T + bc  (MXU, f32 accumulation)
    h = jnp.dot(x, wc_ref[...], preferred_element_type=jnp.float32)
    h = h + bc_ref[...]

    # chaotic perturbation: h + sin(h)*cos(h) == h + 0.5*sin(2h)  (one EUP op)
    h = h + 0.5 * jnp.sin(2.0 * h)

    # nonlinear purification: Tanh -> Sigmoid -> ReLU.
    # sigmoid(z) = 0.5*(1 + tanh(z/2)) -> two tanh instead of tanh+exp+div;
    # ReLU is a no-op on a sigmoid output (strictly positive).
    h = 0.5 + 0.5 * jnp.tanh(0.5 * jnp.tanh(h))

    # expand: h @ We^T + be  (MXU, f32 accumulation)
    o = jnp.dot(h.astype(we_ref.dtype), we_ref[...],
                preferred_element_type=jnp.float32)
    o_ref[...] = (o + be_ref[...]).astype(o_ref.dtype)


def prepare_params(params, *, use_bf16=True):
    """Pad weights to lane multiples and cast to the MXU dtype ONCE (init time)
    so there is no per-call HBM pad/convert pass over the weights."""
    wc_t, bc, we_t, be = params["wc_t"], params["bc"], params["we_t"], params["be"]
    D, H = wc_t.shape
    Dp, Hp = _round_up(D, LANE), _round_up(H, LANE)
    mxu_dtype = jnp.bfloat16 if use_bf16 else wc_t.dtype
    return {
        "d_model": D,
        "hidden": H,
        # Zero padding is exact: padded hidden columns produce sigmoid(tanh(0))
        # but hit zero expand-weight rows; padded output columns get 0.
        "wc_t": jnp.pad(wc_t, ((0, Dp - D), (0, Hp - H))).astype(mxu_dtype),
        "bc": jnp.pad(bc, (0, Hp - H)).reshape(1, Hp).astype(jnp.float32),
        "we_t": jnp.pad(we_t, ((0, Hp - H), (0, Dp - D))).astype(mxu_dtype),
        "be": jnp.pad(be, (0, Dp - D)).reshape(1, Dp).astype(jnp.float32),
    }


def temple_heart(x, prepared, *, out_dtype=None, min_steps=8):
    """x: (M, D).  prepared: dict from prepare_params (padded, MXU-dtype weights)."""
    M, D = x.shape
    assert D == prepared["d_model"]
    Dp, Hp = prepared["wc_t"].shape
    out_dtype = x.dtype if out_dtype is None else out_dtype

    # 16-row alignment: bf16 vregs pack (16, 128); avoids half-empty vregs /
    # masked partial stores for small M.
    row_align = 16

    bx = jnp.dtype(x.dtype).itemsize
    bw = jnp.dtype(prepared["wc_t"].dtype).itemsize
    bo = jnp.dtype(out_dtype).itemsize

    # ---- generation-aware VMEM budgeting ---------------------------------
    vmem_cap = _vmem_capacity_bytes()               # 128 MiB v5e/v6e, 64 MiB/TC v7x
    vmem_limit_cap = vmem_cap - max(16 * 1024 * 1024, vmem_cap // 4)  # ~96 / ~48 MiB

    # Weights + biases VMEM-resident once (single-buffered).
    w_bytes = 2 * Dp * Hp * bw + (Hp + Dp) * 4
    # TODO(synk): stream weight tiles over a K/N grid axis when d_model is too
    # large for full VMEM residency (w_bytes above half the usable VMEM).
    assert w_bytes <= vmem_limit_cap // 2, "d_model too large for resident weights"

    # Row-tile budget EXCLUDES the resident weights (no tm collapse for large D).
    tile_budget = vmem_limit_cap - w_bytes - 4 * 1024 * 1024
    tm_target = 1024 if vmem_cap >= 96 * 1024 * 1024 else 512
    tm = min(tm_target, tile_budget // (2 * Dp * (bx + bo)))  # x + out double-buffered
    tm = max(row_align, (tm // row_align) * row_align)

    # Rows padded only to the row alignment (NOT up to a multiple of tm).
    M8 = _round_up(max(M, row_align), row_align)

    # Keep >= min_steps grid steps when rows allow (v7x: 2 TCs + per-TC pipeline).
    tm = min(tm, max(row_align, _round_up(-(-M8 // min_steps), row_align)))

    # Last block may be partial: rows are independent, so garbage rows in a
    # partial input block never contaminate valid rows, and their writeback is
    # masked by Pallas.
    grid_m = pl.cdiv(M8, tm)

    working_set = w_bytes + 2 * tm * Dp * (bx + bo)
    vmem_limit = int(min(vmem_limit_cap,
                         max(32 * 1024 * 1024, working_set + 8 * 1024 * 1024)))

    # Only touch x when padding is actually needed (a pad pass is an extra HBM
    # round trip); the bf16 cast happens inside the kernel.
    needs_pad = (M8 != M) or (Dp != D)
    xp = jnp.pad(x, ((0, M8 - M), (0, Dp - D))) if needs_pad else x

    vmem_resident = pl.BlockSpec(memory_space=pltpu.MemorySpace.VMEM)

    out = pl.pallas_call(
        temple_heart_kernel,
        out_shape=jax.ShapeDtypeStruct((M8, Dp), out_dtype),
        grid_spec=pltpu.PrefetchScalarGridSpec(
            num_scalar_prefetch=0,
            grid=(grid_m,),
            in_specs=[
                pl.BlockSpec((tm, Dp), lambda i: (i, 0)),  # x tile (pipelined)
                vmem_resident,                             # compress weight
                vmem_resident,                             # compress bias
                vmem_resident,                             # expand weight
                vmem_resident,                             # expand bias
            ],
            out_specs=pl.BlockSpec((tm, Dp), lambda i: (i, 0)),
        ),
        compiler_params=pltpu.CompilerParams(
            dimension_semantics=("parallel",),
            vmem_limit_bytes=vmem_limit,
        ),
    )(xp, prepared["wc_t"], prepared["bc"], prepared["we_t"], prepared["be"])

    if needs_pad:
        out = out[:M, :D]
    return out


def temple_heart_module(x_bsd, prepared, *, out_dtype=None):
    """Wrapper matching the PyTorch forward: x of shape (B, S, D)."""
    B, S, D = x_bsd.shape
    out = temple_heart(x_bsd.reshape(B * S, D), prepared, out_dtype=out_dtype)
    return out.reshape(B, S, D)


def init_params(key, d_model):
    """Deterministic init mimicking nn.Linear's uniform(-1/sqrt(fan_in), ...)."""
    h = d_model // 2
    k1, k2, k3, k4 = jax.random.split(key, 4)
    lim_c = 1.0 / jnp.sqrt(d_model)
    lim_e = 1.0 / jnp.sqrt(h)
    # Stored pre-transposed: (in, out)
    wc_t = jax.random.uniform(k1, (d_model, h), jnp.float32, -lim_c, lim_c)
    bc = jax.random.uniform(k2, (h,), jnp.float32, -lim_c, lim_c)
    we_t = jax.random.uniform(k3, (h, d_model), jnp.float32, -lim_e, lim_e)
    be = jax.random.uniform(k4, (d_model,), jnp.float32, -lim_e, lim_e)
    return {"wc_t": wc_t, "bc": bc, "we_t": we_t, "be": be}


def temple_heart_ref(x_bsd, params):
    """Pure-JAX f32 reference of the PyTorch forward."""
    h = x_bsd @ params["wc_t"] + params["bc"]
    h = h + jnp.sin(h) * jnp.cos(h)
    h = jnp.maximum(jax.nn.sigmoid(jnp.tanh(h)), 0.0)
    return h @ params["we_t"] + params["be"]


if __name__ == "__main__":
    key = jax.random.PRNGKey(0)
    k_x, k_p = jax.random.split(key)

    B, S, D = 2, 8, 32          # d_model = 32  ->  hidden = 16
    x = jax.random.normal(k_x, (B, S, D), jnp.float32)
    params = init_params(k_p, D)
    prepared = prepare_params(params, use_bf16=True)   # one-time pad + bf16 cast

    out = temple_heart_module(x, prepared)
    out = jax.block_until_ready(out)

    ref = temple_heart_ref(x, params)
    assert out.shape == (B, S, D)
    # bf16 MXU inputs with f32 accumulation -> loosened tolerance vs f32 ref.
    assert jnp.allclose(out, ref, atol=2e-2, rtol=2e-2), "mismatch vs reference"

    print("KERNEL_OK")
</pallas_src>

<mosaic_0001>
module attributes {stable_mosaic.version = 11 : i64} {
  func.func @temple_heart_kernel(%arg0: i32, %arg1: memref<16x128xf32, #tpu.memory_space<vmem>>, %arg2: memref<128x128xbf16, #tpu.memory_space<vmem>>, %arg3: memref<1x128xf32, #tpu.memory_space<vmem>>, %arg4: memref<128x128xbf16, #tpu.memory_space<vmem>>, %arg5: memref<1x128xf32, #tpu.memory_space<vmem>>, %arg6: memref<16x128xf32, #tpu.memory_space<vmem>>) attributes {dimension_semantics = [#tpu.dimension_semantics<parallel>], iteration_bounds = array<i64: 1>, scalar_prefetch = 0 : i64, scratch_operands = 0 : i64, tpu.core_type = #tpu.core_type<tc>, window_params = [{transform_indices = @transform_0, window_bounds = array<i64: 16, 128>}, {pipeline_mode = #tpu.pipeline_mode<synchronous>, transform_indices = @transform_1, window_bounds = array<i64: 128, 128>}, {pipeline_mode = #tpu.pipeline_mode<synchronous>, transform_indices = @transform_2, window_bounds = array<i64: 1, 128>}, {pipeline_mode = #tpu.pipeline_mode<synchronous>, transform_indices = @transform_3, window_bounds = array<i64: 128, 128>}, {pipeline_mode = #tpu.pipeline_mode<synchronous>, transform_indices = @transform_4, window_bounds = array<i64: 1, 128>}, {transform_indices = @transform_5, window_bounds = array<i64: 16, 128>}]} {
    %c0 = arith.constant 0 : index
    %c0_0 = arith.constant 0 : index
    %0 = vector.load %arg1[%c0, %c0_0] : memref<16x128xf32, #tpu.memory_space<vmem>>, vector<16x128xf32>
    %1 = arith.truncf %0 : vector<16x128xf32> to vector<16x128xbf16>
    %c0_1 = arith.constant 0 : index
    %c0_2 = arith.constant 0 : index
    %2 = vector.load %arg2[%c0_1, %c0_2] : memref<128x128xbf16, #tpu.memory_space<vmem>>, vector<128x128xbf16>
    %cst = arith.constant dense<0.000000e+00> : vector<16x128xf32>
    %3 = tpu.matmul %1, %2, %cst {dimension_numbers = #tpu.dot_dimension_numbers<[1], [0], [0], [1], [0, 0, 1, 1], [], []>} : vector<16x128xbf16>, vector<128x128xbf16>, vector<16x128xf32> -> vector<16x128xf32>
    %c0_3 = arith.constant 0 : index
    %c0_4 = arith.constant 0 : index
    %4 = vector.load %arg3[%c0_3, %c0_4] : memref<1x128xf32, #tpu.memory_space<vmem>>, vector<1x128xf32>
    %5 = vector.broadcast %4 : vector<1x128xf32> to vector<16x128xf32>
    %6 = arith.addf %3, %5 : vector<16x128xf32>
    %cst_5 = arith.constant 2.000000e+00 : f32
    %7 = vector.broadcast %cst_5 : f32 to vector<16x128xf32>
    %8 = arith.mulf %7, %6 : vector<16x128xf32>
    %9 = math.sin %8 : vector<16x128xf32>
    %cst_6 = arith.constant 5.000000e-01 : f32
    %10 = vector.broadcast %cst_6 : f32 to vector<16x128xf32>
    %11 = arith.mulf %10, %9 : vector<16x128xf32>
    %12 = arith.addf %6, %11 : vector<16x128xf32>
    %13 = math.tanh %12 : vector<16x128xf32>
    %cst_7 = arith.constant 5.000000e-01 : f32
    %14 = vector.broadcast %cst_7 : f32 to vector<16x128xf32>
    %15 = arith.mulf %14, %13 : vector<16x128xf32>
    %16 = math.tanh %15 : vector<16x128xf32>
    %cst_8 = arith.constant 5.000000e-01 : f32
    %17 = vector.broadcast %cst_8 : f32 to vector<16x128xf32>
    %18 = arith.mulf %17, %16 : vector<16x128xf32>
    %cst_9 = arith.constant 5.000000e-01 : f32
    %19 = vector.broadcast %cst_9 : f32 to vector<16x128xf32>
    %20 = arith.addf %19, %18 : vector<16x128xf32>
    %21 = arith.truncf %20 : vector<16x128xf32> to vector<16x128xbf16>
    %c0_10 = arith.constant 0 : index
    %c0_11 = arith.constant 0 : index
    %22 = vector.load %arg4[%c0_10, %c0_11] : memref<128x128xbf16, #tpu.memory_space<vmem>>, vector<128x128xbf16>
    %cst_12 = arith.constant dense<0.000000e+00> : vector<16x128xf32>
    %23 = tpu.matmul %21, %22, %cst_12 {dimension_numbers = #tpu.dot_dimension_numbers<[1], [0], [0], [1], [0, 0, 1, 1], [], []>} : vector<16x128xbf16>, vector<128x128xbf16>, vector<16x128xf32> -> vector<16x128xf32>
    %c0_13 = arith.constant 0 : index
    %c0_14 = arith.constant 0 : index
    %24 = vector.load %arg5[%c0_13, %c0_14] : memref<1x128xf32, #tpu.memory_space<vmem>>, vector<1x128xf32>
    %25 = vector.broadcast %24 : vector<1x128xf32> to vector<16x128xf32>
    %26 = arith.addf %23, %25 : vector<16x128xf32>
    %c0_15 = arith.constant 0 : index
    %c0_16 = arith.constant 0 : index
    %27 = vector.load %arg6[%c0_15, %c0_16] : memref<16x128xf32, #tpu.memory_space<vmem>>, vector<16x128xf32>
    tpu.vector_store %arg6[%c0_15, %c0_16], %26 {strides = array<i32>} : memref<16x128xf32, #tpu.memory_space<vmem>>, vector<16x128xf32>,
    return
  }
  func.func @transform_0(%arg0: i32) -> (i32, i32) {
    %c0_i32 = arith.constant 0 : i32
    %c0_i32_0 = arith.constant 0 : i32
    return %arg0, %c0_i32 : i32, i32
  }
  func.func @transform_1(%arg0: i32) -> (i32, i32) {
    %c0_i32 = arith.constant 0 : i32
    %c0_i32_0 = arith.constant 0 : i32
    %c0_i32_1 = arith.constant 0 : i32
    return %c0_i32, %c0_i32_0 : i32, i32
  }
  func.func @transform_2(%arg0: i32) -> (i32, i32) {
    %c0_i32 = arith.constant 0 : i32
    %c0_i32_0 = arith.constant 0 : i32
    %c0_i32_1 = arith.constant 0 : i32
    return %c0_i32, %c0_i32_0 : i32, i32
  }
  func.func @transform_3(%arg0: i32) -> (i32, i32) {
    %c0_i32 = arith.constant 0 : i32
    %c0_i32_0 = arith.constant 0 : i32
    %c0_i32_1 = arith.constant 0 : i32
    return %c0_i32, %c0_i32_0 : i32, i32
  }
  func.func @transform_4(%arg0: i32) -> (i32, i32) {
    %c0_i32 = arith.constant 0 : i32
    %c0_i32_0 = arith.constant 0 : i32
    %c0_i32_1 = arith.constant 0 : i32
    return %c0_i32, %c0_i32_0 : i32, i32
  }
  func.func @transform_5(%arg0: i32) -> (i32, i32) {
    %c0_i32 = arith.constant 0 : i32
    %c0_i32_0 = arith.constant 0 : i32
    return %arg0, %c0_i32 : i32, i32
  }
}

</mosaic_0001>

<llo_original>
// kernel: tpu_custom_call.1
$region0: #{tpu_custom_call.1}
  #allocation0 [shape = 'u32[]', space=smem, size = 0x4, offset = 0x4, fixed_abs, tag = 'smem constant byte address 0x4 - core index']
  #allocation1 [shape = 'u32[144,128]{1,0:T(1,128)}', space=vmem, size = 0x12000, scoped, tag = 'internal scratch']
  %s0 = inlined_call_operand.hbm [shape: f32[16,128], index: 0, kind: input, shape index: {}]
  %s1 = inlined_call_operand.hbm [shape: bf16[128,128], index: 1, kind: input, shape index: {}]
  %s2 = inlined_call_operand.vmem [shape: f32[1,128], index: 2, kind: input, shape index: {}]
  %s3 = inlined_call_operand.hbm [shape: bf16[128,128], index: 3, kind: input, shape index: {}]
  %s4 = inlined_call_operand.vmem [shape: f32[1,128], index: 4, kind: input, shape index: {}]
  %s5 = inlined_call_operand.hbm [shape: f32[16,128], index: 5, kind: output, shape index: {}]
  %s6 = sld [smem:[#allocation0]]
  $region42: #{tpu_custom_call.1} parent=0
    _
  %s8 = ssub.s32 1, %s6
  %s9 = scalar_select 0, %s8, %s6
  $region1: #{tpu_custom_call.1} parent=0
    #allocation2 [shape = 'u8[8192]{0}', space=vmem, size = 0x2000, scoped, tag = 'input window, operand 0, single buffered']
    #allocation3 [shape = 's32[1]{0}', space=sflag, size = 0x4, scoped, tag = 'scoped memory for tpu_custom_call.1']
    #allocation4 [shape = 's32[1]{0}', space=sflag, size = 0x4, scoped, tag = 'scoped memory for tpu_custom_call.1']
    #allocation5 [shape = 'u8[32768]{0}', space=vmem, size = 0x8000, scoped, tag = 'input window, operand 1, single buffered']
    #allocation6 [shape = 's32[1]{0}', space=sflag, size = 0x4, scoped, tag = 'scoped memory for tpu_custom_call.1']
    #allocation7 [shape = 'u8[32768]{0}', space=vmem, size = 0x8000, scoped, tag = 'input window, operand 3, single buffered']
    #allocation8 [shape = 'u8[8192]{0}', space=vmem, size = 0x2000, scoped, tag = 'output window, operand 0, single buffered']
    %10 = vsyncpa [#allocation3], 0
    %11 = vsyncpa [#allocation6], 0
    %12 = vsyncpa [#allocation4], 0
    // Predicated region
    $region2: #{tpu_custom_call.1} parent=1 // pred_check
      _
    $region3: #{tpu_custom_call.1} parent=1 // pred_check_branch
      %14 = sbr.rel (0) target = $region5
    $region4: #{tpu_custom_call.1} parent=1 // pred_region
      %s16 = ssub.s32 256, 256
      %17 = vsyncadd [#allocation3], %s16
      %s18 = sshll.u32 [#allocation2], 4
      %s19 = int_to_ptr.vmem [resolvable:$true] %s18
      %24 = dma.hbm_to_vmem [thread:$0]  %s0, 256, %s19, [#allocation3], 128, 128, 8
    $region5: #{tpu_custom_call.1} parent=1 // pred_fallthru
      _
    // Predicated region
    $region6: #{tpu_custom_call.1} parent=1 // pred_check
      _
    $region7: #{tpu_custom_call.1} parent=1 // pred_check_branch
      %26 = sbr.rel (0) target = $region9
    $region8: #{tpu_custom_call.1} parent=1 // pred_region
      %s28 = ssub.s32 1024, 1024
      %29 = vsyncadd [#allocation6], %s28
      %s30 = sshll.u32 [#allocation5], 4
      %s31 = int_to_ptr.vmem [resolvable:$true] %s30
      %36 = dma.hbm_to_vmem [thread:$0]  %s1, 1024, %s31, [#allocation6], 64, 64, 4
    $region9: #{tpu_custom_call.1} parent=1 // pred_fallthru
      _
    // Predicated region
    $region10: #{tpu_custom_call.1} parent=1 // pred_check
      _
    $region11: #{tpu_custom_call.1} parent=1 // pred_check_branch
      %38 = sbr.rel (0) target = $region13
    $region12: #{tpu_custom_call.1} parent=1 // pred_region
      _
    $region13: #{tpu_custom_call.1} parent=1 // pred_fallthru
      _
    // Predicated region
    $region14: #{tpu_custom_call.1} parent=1 // pred_check
      _
    $region15: #{tpu_custom_call.1} parent=1 // pred_check_branch
      %40 = sbr.rel (0) target = $region17
    $region16: #{tpu_custom_call.1} parent=1 // pred_region
      %s42 = ssub.s32 1024, 1024
      %43 = vsyncadd [#allocation6], %s42
      %s44 = sshll.u32 [#allocation7], 4
      %s45 = int_to_ptr.vmem [resolvable:$true] %s44
      %50 = dma.hbm_to_vmem [thread:$0]  %s3, 1024, %s45, [#allocation6], 64, 64, 4
    $region17: #{tpu_custom_call.1} parent=1 // pred_fallthru
      _
    // Predicated region
    $region18: #{tpu_custom_call.1} parent=1 // pred_check
      _
    $region19: #{tpu_custom_call.1} parent=1 // pred_check_branch
      %52 = sbr.rel (0) target = $region21
    $region20: #{tpu_custom_call.1} parent=1 // pred_region
      _
    $region21: #{tpu_custom_call.1} parent=1 // pred_fallthru
      _
    // Predicated region
    $region22: #{tpu_custom_call.1} parent=1 // pred_check
      _
    $region23: #{tpu_custom_call.1} parent=1 // pred_check_branch
      %54 = sbr.rel (0) target = $region25
    $region24: #{tpu_custom_call.1} parent=1 // pred_region
      %55 = dma.done [#allocation3], 256
    $region25: #{tpu_custom_call.1} parent=1 // pred_fallthru
      _
    // Predicated region
    $region26: #{tpu_custom_call.1} parent=1 // pred_check
      _
    $region27: #{tpu_custom_call.1} parent=1 // pred_check_branch
      %57 = sbr.rel (0) target = $region29
    $region28: #{tpu_custom_call.1} parent=1 // pred_region
      %58 = dma.done [#allocation6], 1024
    $region29: #{tpu_custom_call.1} parent=1 // pred_fallthru
      _
    // Predicated region
    $region30: #{tpu_custom_call.1} parent=1 // pred_check
      _
    $region31: #{tpu_custom_call.1} parent=1 // pred_check_branch
      %60 = sbr.rel (0) target = $region33
    $region32: #{tpu_custom_call.1} parent=1 // pred_region
      %61 = dma.done [#allocation6], 1024
    $region33: #{tpu_custom_call.1} parent=1 // pred_fallthru
      _
    %v63 = vld [vmem:[#allocation2] sm:$0xff]
    %v64 = vld [vmem:[#allocation2 + $0x8] sm:$0xff]
    %v65 = vpack.c.bf16 %v64, %v63
    %v66 = vld [vmem:[#allocation5] sm:$0xf]
    %v67 = vld [vmem:[#allocation5 + $0x4] sm:$0xf]
    %v68 = vld [vmem:[#allocation5 + $0x8] sm:$0xf]
    %v69 = vld [vmem:[#allocation5 + $0xc] sm:$0xf]
    %v70 = vld [vmem:[#allocation5 + $0x10] sm:$0xf]
    %v71 = vld [vmem:[#allocation5 + $0x14] sm:$0xf]
    %v72 = vld [vmem:[#allocation5 + $0x18] sm:$0xf]
    %v73 = vld [vmem:[#allocation5 + $0x1c] sm:$0xf]
    %v74 = vld [vmem:[#allocation5 + $0x20] sm:$0xf]
    %v75 = vld [vmem:[#allocation5 + $0x24] sm:$0xf]
    %v76 = vld [vmem:[#allocation5 + $0x28] sm:$0xf]
    %v77 = vld [vmem:[#allocation5 + $0x2c] sm:$0xf]
    %v78 = vld [vmem:[#allocation5 + $0x30] sm:$0xf]
    %v79 = vld [vmem:[#allocation5 + $0x34] sm:$0xf]
    %v80 = vld [vmem:[#allocation5 + $0x38] sm:$0xf]
    %v81 = vld [vmem:[#allocation5 + $0x3c] sm:$0xf]
    %v82 = vld [vmem:[%s2] sm:$0x1]
    %v84 = vlaneseq
    %v85 = vshrl.u32 %v84, 7
    %v86 = vsub.s32 0, %v85
    %v87 = vrot.slane %v82, %v86
    %v105 = vunpack.c.l.b16 %v66
    %v106 = vunpack.c.l.b16 %v67
    %v107 = vunpack.c.l.b16 %v68
    %v108 = vunpack.c.l.b16 %v69
    %v109 = vunpack.c.l.b16 %v70
    %v110 = vunpack.c.l.b16 %v71
    %v111 = vunpack.c.l.b16 %v72
    %v112 = vunpack.c.l.b16 %v73
    %v113 = vunpack.c.l.b16 %v74
    %v114 = vunpack.c.l.b16 %v75
    %v115 = vunpack.c.l.b16 %v76
    %v116 = vunpack.c.l.b16 %v77
    %v117 = vunpack.c.l.b16 %v78
    %v118 = vunpack.c.l.b16 %v79
    %v119 = vunpack.c.l.b16 %v80
    %v120 = vunpack.c.l.b16 %v81
    %v121 = vpack.c.b16 %v106, %v105
    %v122 = vpack.c.b16 %v108, %v107
    %v123 = vpack.c.b16 %v110, %v109
    %v124 = vpack.c.b16 %v112, %v111
    %v125 = vpack.c.b16 %v114, %v113
    %v126 = vpack.c.b16 %v116, %v115
    %v127 = vpack.c.b16 %v118, %v117
    %v128 = vpack.c.b16 %v120, %v119
    %137 = vmatprep.subr.bf16.mxu0 0
    %138 = vmatpush1.bf16.msra.mxu0 %v121
    %139 = vmatprep.subr.bf16.mxu0 0
    %140 = vmatpush1.bf16.msra.mxu0 %v122
    %141 = vmatprep.subr.bf16.mxu0 0
    %142 = vmatpush1.bf16.msra.mxu0 %v123
    %143 = vmatprep.subr.bf16.mxu0 0
    %144 = vmatpush1.bf16.msra.mxu0 %v124
    %145 = vmatprep.subr.bf16.mxu0 0
    %146 = vmatpush1.bf16.msra.mxu0 %v125
    %147 = vmatprep.subr.bf16.mxu0 0
    %148 = vmatpush1.bf16.msra.mxu0 %v126
    %149 = vmatprep.subr.bf16.mxu0 0
    %150 = vmatpush1.bf16.msra.mxu0 %v127
    %151 = vmatprep.subr.bf16.mxu0 0
    %152 = vmatpush1.bf16.msra.mxu0 %v128
    %153 = vmatprep.subr.bf16.mxu0 0
    %154 = vmatpush1.bf16.msra.mxu0 0
    %155 = vmatprep.subr.bf16.mxu0 0
    %156 = vmatpush1.bf16.msra.mxu0 0
    %157 = vmatprep.subr.bf16.mxu0 0
    %158 = vmatpush1.bf16.msra.mxu0 0
    %159 = vmatprep.subr.bf16.mxu0 0
    %160 = vmatpush1.bf16.msra.mxu0 0
    %161 = vmatprep.subr.bf16.mxu0 0
    %162 = vmatpush1.bf16.msra.mxu0 0
    %163 = vmatprep.subr.bf16.mxu0 0
    %164 = vmatpush1.bf16.msra.mxu0 0
    %165 = vmatprep.subr.bf16.mxu0 0
    %166 = vmatpush1.bf16.msra.mxu0 0
    %167 = vmatprep.subr.bf16.mxu0 0
    %168 = vmatpush1.bf16.msra.mxu0 0
    %169 = vmatprep.mubr.bf16.mxu0 0
    %170 = vmatmul.mubr.bf16.gmra.mrb[0].mxu0 %v65
    %v171 = vpop.f32.mrb[0].mxu0
    %v172 = vadd.f32 %v87, %v171
    %v173 = vpop.f32.mrb[0].mxu0
    %v174 = vpop.f32.mrb[0].mxu0
    %v175 = vadd.f32 %v87, %v174
    %v176 = vpop.f32.mrb[0].mxu0
    %177 = vdwg.mxu0
    %v178 = vmul.f32 %v172, 2.0
    %v179 = vmul.f32 %v175, 2.0
    %v180 = vand.u32 2147483647, %v178
    %vm181 = vcmp.le.f32.partialorder %v180, 0.7853982
    %vm182 = vcmp.lt.s32.totalorder %v178, 0
    %v183 = vand.u32 %v178, 2139095040
    %v184 = vshrl.u32 %v183, 23
    %v185 = vsub.s32 %v184, 127
    %v186 = vand.u32 2147483647, %v178
    %v187 = vand.u32 %v186, 8388607
    %v188 = vor.u32 %v187, 8388608
    %v189 = vsub.s32 0, %v188
    %v190 = vadd.s32 %v185, 1
    %vm191 = vcmp.gt.s32.totalorder %v190, 0
    %v192 = vsel %vm191, %v190, 0
    %v193 = vshrl.u32 %v192, 5
    %v194 = vand.u32 %v192, 31
    %v195 = vsub.s32 32, %v194
    %v196 = vshrl.u32 683565275, %v195
    %v197 = vshll.u32 683565275, %v194
    %v198 = vshrl.u32 2475754826, %v195
    %v199 = vor.u32 %v197, %v198
    %v200 = vshll.u32 2475754826, %v194
    %v201 = vshrl.u32 2131351028, %v195
    %v202 = vor.u32 %v200, %v201
    %v203 = vshll.u32 2131351028, %v194
    %v204 = vshrl.u32 2102212464, %v195
    %v205 = vor.u32 %v203, %v204
    %v206 = vshll.u32 2102212464, %v194
    %v207 = vshrl.u32 920167782, %v195
    %v208 = vor.u32 %v206, %v207
    %v209 = vshll.u32 920167782, %v194
    %v210 = vshrl.u32 1326507024, %v195
    %v211 = vor.u32 %v209, %v210
    %vm212 = vcmp.lt.s32.totalorder %v193, 1
    %vm213 = vcmp.lt.s32.totalorder %v193, 2
    %vm214 = vcmp.lt.s32.totalorder %v193, 3
    %vm215 = vcmp.lt.s32.totalorder %v193, 4
    %v216 = vsel %vm212, %v196, %v199
    %v217 = vsel %vm215, %v205, 2102212464
    %v218 = vsel %vm214, %v202, %v217
    %v219 = vsel %vm213, %v216, %v218
    %v220 = vsel %vm212, %v199, %v202
    %v221 = vsel %vm215, %v208, 920167782
    %v222 = vsel %vm214, %v205, %v221
    %v223 = vsel %vm213, %v220, %v222
    %v224 = vsel %vm212, %v202, %v205
    %v225 = vsel %vm215, %v211, 1326507024
    %v226 = vsel %vm214, %v208, %v225
    %v227 = vsel %vm213, %v224, %v226
    %v228 = vshll.u32 %v188, 8
    %v229 = vmul.u32.u64.compose %v228, %v227
    %v230 = vextract.low.u32 %v229
    %v231 = vextract.high.u32 %v229
    %v232 = vmul.u32.u64.compose %v228, %v223
    %v233 = vextract.low.u32 %v232
    %v234 = vextract.high.u32 %v232
    %v235 = vmul.u32 %v228, %v219
    %v236 = vadd.s32 %v231, %v233
    %vm237 = vc.u32 %v231, %v233
    %v238 = vadd.s32 %v234, 1
    %v239 = vsel %vm237, %v238, %v234
    %v240 = vadd.s32 %v235, %v239
    %v241 = vadd.s32 %v240, 536870912
    %v242 = vshrl.u32 %v241, 30
    %v243 = vshll.u32 %v242, 30
    %v244 = vsub.s32 %v240, %v243
    %vm245 = vcmp.lt.s32.totalorder %v244, 0
    %v246 = vsub.s32 0, %v244
    %v247 = vsel %vm245, %v246, %v244
    %v248 = vclz %v247
    %v249 = vsub.s32 %v248, 2
    %vm250 = vcmp.gt.s32.totalorder 0, %v249
    %v251 = vsel %vm250, 0, %v249
    %v252 = vsub.s32 32, %v251
    %v253 = vshll.u32 %v244, %v251
    %v254 = vshrl.u32 %v236, %v252
    %v255 = vor.u32 %v253, %v254
    %v256 = vsub.s32 4294967266, %v251
    %v257 = vadd.s32 %v256, 127
    %v258 = vshll.u32 %v257, 23
    %v259 = vor.u32 4788187, %v258
    %v260 = vand.u32 2147483647, %v259
    %v262 = vcvt.s32.f32 %v255
    %v263 = vmul.f32 %v262, %v260
    %v264 = vxor.u32 %v263, 2147483648
    %v265 = vsel %vm182, %v264, %v263
    %v266 = vsub.s32 4, %v242
    %v267 = vsel %vm182, %v266, %v242
    %v268 = vsel %vm181, %v178, %v265
    %v269 = vsel %vm181, 0, %v267
    %v270 = vcosq.f32.pop %v268
    %v271 = vsinq.f32.pop %v268
    %vm272 = vweird.f32 %v178
    %v273 = vadd.s32 %v269, 3
    %v274 = vand.u32 %v273, 3
    %vm275 = vcmp.lt.s32.totalorder %v274, 2
    %vm276 = vcmp.eq.s32.totalorder %v274, 0
    %v277 = vxor.u32 %v271, 2147483648
    %v278 = vsel %vm276, %v270, %v277
    %vm279 = vcmp.eq.s32.totalorder %v274, 2
    %v280 = vxor.u32 %v270, 2147483648
    %v281 = vsel %vm279, %v280, %v271
    %v282 = vsel %vm275, %v278, %v281
    %v283 = vsel %vm272, nan, %v282
    %v284 = vand.u32 2147483647, %v179
    %vm285 = vcmp.le.f32.partialorder %v284, 0.7853982
    %vm286 = vcmp.lt.s32.totalorder %v179, 0
    %v287 = vand.u32 %v179, 2139095040
    %v288 = vshrl.u32 %v287, 23
    %v289 = vsub.s32 %v288, 127
    %v290 = vand.u32 2147483647, %v179
    %v291 = vand.u32 %v290, 8388607
    %v292 = vor.u32 %v291, 8388608
    %v293 = vsub.s32 0, %v292
    %v294 = vadd.s32 %v289, 1
    %vm295 = vcmp.gt.s32.totalorder %v294, 0
    %v296 = vsel %vm295, %v294, 0
    %v297 = vshrl.u32 %v296, 5
    %v298 = vand.u32 %v296, 31
    %v299 = vsub.s32 32, %v298
    %v300 = vshrl.u32 683565275, %v299
    %v301 = vshll.u32 683565275, %v298
    %v302 = vshrl.u32 2475754826, %v299
    %v303 = vor.u32 %v301, %v302
    %v304 = vshll.u32 2475754826, %v298
    %v305 = vshrl.u32 2131351028, %v299
    %v306 = vor.u32 %v304, %v305
    %v307 = vshll.u32 2131351028, %v298
    %v308 = vshrl.u32 2102212464, %v299
    %v309 = vor.u32 %v307, %v308
    %v310 = vshll.u32 2102212464, %v298
    %v311 = vshrl.u32 920167782, %v299
    %v312 = vor.u32 %v310, %v311
    %v313 = vshll.u32 920167782, %v298
    %v314 = vshrl.u32 1326507024, %v299
    %v315 = vor.u32 %v313, %v314
    %vm316 = vcmp.lt.s32.totalorder %v297, 1
    %vm317 = vcmp.lt.s32.totalorder %v297, 2
    %vm318 = vcmp.lt.s32.totalorder %v297, 3
    %vm319 = vcmp.lt.s32.totalorder %v297, 4
    %v320 = vsel %vm316, %v300, %v303
    %v321 = vsel %vm319, %v309, 2102212464
    %v322 = vsel %vm318, %v306, %v321
    %v323 = vsel %vm317, %v320, %v322
    %v324 = vsel %vm316, %v303, %v306
    %v325 = vsel %vm319, %v312, 920167782
    %v326 = vsel %vm318, %v309, %v325
    %v327 = vsel %vm317, %v324, %v326
    %v328 = vsel %vm316, %v306, %v309
    %v329 = vsel %vm319, %v315, 1326507024
    %v330 = vsel %vm318, %v312, %v329
    %v331 = vsel %vm317, %v328, %v330
    %v332 = vshll.u32 %v292, 8
    %v333 = vmul.u32.u64.compose %v332, %v331
    %v334 = vextract.low.u32 %v333
    %v335 = vextract.high.u32 %v333
    %v336 = vmul.u32.u64.compose %v332, %v327
    %v337 = vextract.low.u32 %v336
    %v338 = vextract.high.u32 %v336
    %v339 = vmul.u32 %v332, %v323
    %v340 = vadd.s32 %v335, %v337
    %vm341 = vc.u32 %v335, %v337
    %v342 = vadd.s32 %v338, 1
    %v343 = vsel %vm341, %v342, %v338
    %v344 = vadd.s32 %v339, %v343
    %v345 = vadd.s32 %v344, 536870912
    %v346 = vshrl.u32 %v345, 30
    %v347 = vshll.u32 %v346, 30
    %v348 = vsub.s32 %v344, %v347
    %vm349 = vcmp.lt.s32.totalorder %v348, 0
    %v350 = vsub.s32 0, %v348
    %v351 = vsel %vm349, %v350, %v348
    %v352 = vclz %v351
    %v353 = vsub.s32 %v352, 2
    %vm354 = vcmp.gt.s32.totalorder 0, %v353
    %v355 = vsel %vm354, 0, %v353
    %v356 = vsub.s32 32, %v355
    %v357 = vshll.u32 %v348, %v355
    %v358 = vshrl.u32 %v340, %v356
    %v359 = vor.u32 %v357, %v358
    %v360 = vsub.s32 4294967266, %v355
    %v361 = vadd.s32 %v360, 127
    %v362 = vshll.u32 %v361, 23
    %v363 = vor.u32 4788187, %v362
    %v364 = vand.u32 2147483647, %v363
    %v366 = vcvt.s32.f32 %v359
    %v367 = vmul.f32 %v366, %v364
    %v368 = vxor.u32 %v367, 2147483648
    %v369 = vsel %vm286, %v368, %v367
    %v370 = vsub.s32 4, %v346
    %v371 = vsel %vm286, %v370, %v346
    %v372 = vsel %vm285, %v179, %v369
    %v373 = vsel %vm285, 0, %v371
    %v374 = vcosq.f32.pop %v372
    %v375 = vsinq.f32.pop %v372
    %vm376 = vweird.f32 %v179
    %v377 = vadd.s32 %v373, 3
    %v378 = vand.u32 %v377, 3
    %vm379 = vcmp.lt.s32.totalorder %v378, 2
    %vm380 = vcmp.eq.s32.totalorder %v378, 0
    %v381 = vxor.u32 %v375, 2147483648
    %v382 = vsel %vm380, %v374, %v381
    %vm383 = vcmp.eq.s32.totalorder %v378, 2
    %v384 = vxor.u32 %v374, 2147483648
    %v385 = vsel %vm383, %v384, %v375
    %v386 = vsel %vm379, %v382, %v385
    %v387 = vsel %vm376, nan, %v386
    %v388 = vmul.f32 %v283, 0.5
    %v389 = vmul.f32 %v387, 0.5
    %v390 = vadd.f32 %v172, %v388
    %v391 = vadd.f32 %v175, %v389
    %v392 = vtanh.pop %v390
    %v393 = vtanh.pop %v391
    %v394 = vmul.f32 %v392, 0.5
    %v395 = vmul.f32 %v393, 0.5
    %v396 = vtanh.pop %v394
    %v397 = vtanh.pop %v395
    %v398 = vmul.f32 %v396, 0.5
    %v399 = vmul.f32 %v397, 0.5
    %v400 = vadd.f32 %v398, 0.5
    %v401 = vadd.f32 %v399, 0.5
    %v402 = vpack.c.bf16 %v401, %v400
    %v403 = vld [vmem:[#allocation7] sm:$0xf]
    %v404 = vld [vmem:[#allocation7 + $0x4] sm:$0xf]
    %v405 = vld [vmem:[#allocation7 + $0x8] sm:$0xf]
    %v406 = vld [vmem:[#allocation7 + $0xc] sm:$0xf]
    %v407 = vld [vmem:[#allocation7 + $0x10] sm:$0xf]
    %v408 = vld [vmem:[#allocation7 + $0x14] sm:$0xf]
    %v409 = vld [vmem:[#allocation7 + $0x18] sm:$0xf]
    %v410 = vld [vmem:[#allocation7 + $0x1c] sm:$0xf]
    %v411 = vld [vmem:[#allocation7 + $0x20] sm:$0xf]
    %v412 = vld [vmem:[#allocation7 + $0x24] sm:$0xf]
    %v413 = vld [vmem:[#allocation7 + $0x28] sm:$0xf]
    %v414 = vld [vmem:[#allocation7 + $0x2c] sm:$0xf]
    %v415 = vld [vmem:[#allocation7 + $0x30] sm:$0xf]
    %v416 = vld [vmem:[#allocation7 + $0x34] sm:$0xf]
    %v417 = vld [vmem:[#allocation7 + $0x38] sm:$0xf]
    %v418 = vld [vmem:[#allocation7 + $0x3c] sm:$0xf]
    %v419 = vld [vmem:[%s4] sm:$0x1]
    %v421 = vlaneseq
    %v422 = vshrl.u32 %v421, 7
    %v423 = vsub.s32 0, %v422
    %v424 = vrot.slane %v419, %v423
    %v442 = vunpack.c.l.b16 %v403
    %v443 = vunpack.c.l.b16 %v404
    %v444 = vunpack.c.l.b16 %v405
    %v445 = vunpack.c.l.b16 %v406
    %v446 = vunpack.c.l.b16 %v407
    %v447 = vunpack.c.l.b16 %v408
    %v448 = vunpack.c.l.b16 %v409
    %v449 = vunpack.c.l.b16 %v410
    %v450 = vunpack.c.l.b16 %v411
    %v451 = vunpack.c.l.b16 %v412
    %v452 = vunpack.c.l.b16 %v413
    %v453 = vunpack.c.l.b16 %v414
    %v454 = vunpack.c.l.b16 %v415
    %v455 = vunpack.c.l.b16 %v416
    %v456 = vunpack.c.l.b16 %v417
    %v457 = vunpack.c.l.b16 %v418
    %v458 = vpack.c.b16 %v443, %v442
    %v459 = vpack.c.b16 %v445, %v444
    %v460 = vpack.c.b16 %v447, %v446
    %v461 = vpack.c.b16 %v449, %v448
    %v462 = vpack.c.b16 %v451, %v450
    %v463 = vpack.c.b16 %v453, %v452
    %v464 = vpack.c.b16 %v455, %v454
    %v465 = vpack.c.b16 %v457, %v456
    %474 = vmatprep.subr.bf16.mxu0 0
    %475 = vmatpush1.bf16.msra.mxu0 %v458
    %476 = vmatprep.subr.bf16.mxu0 0
    %477 = vmatpush1.bf16.msra.mxu0 %v459
    %478 = vmatprep.subr.bf16.mxu0 0
    %479 = vmatpush1.bf16.msra.mxu0 %v460
    %480 = vmatprep.subr.bf16.mxu0 0
    %481 = vmatpush1.bf16.msra.mxu0 %v461
    %482 = vmatprep.subr.bf16.mxu0 0
    %483 = vmatpush1.bf16.msra.mxu0 %v462
    %484 = vmatprep.subr.bf16.mxu0 0
    %485 = vmatpush1.bf16.msra.mxu0 %v463
    %486 = vmatprep.subr.bf16.mxu0 0
    %487 = vmatpush1.bf16.msra.mxu0 %v464
    %488 = vmatprep.subr.bf16.mxu0 0
    %489 = vmatpush1.bf16.msra.mxu0 %v465
    %490 = vmatprep.subr.bf16.mxu0 0
    %491 = vmatpush1.bf16.msra.mxu0 0
    %492 = vmatprep.subr.bf16.mxu0 0
    %493 = vmatpush1.bf16.msra.mxu0 0
    %494 = vmatprep.subr.bf16.mxu0 0
    %495 = vmatpush1.bf16.msra.mxu0 0
    %496 = vmatprep.subr.bf16.mxu0 0
    %497 = vmatpush1.bf16.msra.mxu0 0
    %498 = vmatprep.subr.bf16.mxu0 0
    %499 = vmatpush1.bf16.msra.mxu0 0
    %500 = vmatprep.subr.bf16.mxu0 0
    %501 = vmatpush1.bf16.msra.mxu0 0
    %502 = vmatprep.subr.bf16.mxu0 0
    %503 = vmatpush1.bf16.msra.mxu0 0
    %504 = vmatprep.subr.bf16.mxu0 0
    %505 = vmatpush1.bf16.msra.mxu0 0
    %506 = vmatprep.mubr.bf16.mxu0 0
    %507 = vmatmul.mubr.bf16.gmra.mrb[0].mxu0 %v402
    %v508 = vpop.f32.mrb[0].mxu0
    %v509 = vadd.f32 %v424, %v508
    %v510 = vpop.f32.mrb[0].mxu0
    %v511 = vpop.f32.mrb[0].mxu0
    %v512 = vadd.f32 %v424, %v511
    %v513 = vpop.f32.mrb[0].mxu0
    %514 = vdwg.mxu0
    %515 = vst [vmem:[#allocation8] sm:$0xff] %v509
    %516 = vst [vmem:[#allocation8 + $0x8] sm:$0xff] %v512
    // Predicated region
    $region34: #{tpu_custom_call.1} parent=1 // pred_check
      _
    $region35: #{tpu_custom_call.1} parent=1 // pred_check_branch
      %518 = sbr.rel (0) target = $region37
    $region36: #{tpu_custom_call.1} parent=1 // pred_region
      %s520 = ssub.s32 256, 256
      %521 = vsyncadd [#allocation4], %s520
      %s522 = sshll.u32 [#allocation8], 4
      %s523 = int_to_ptr.vmem [resolvable:$true] %s522
      %528 = dma.vmem_to_hbm [thread:$0]  %s523, 256, %s5, [#allocation4], 128, 128, 8
    $region37: #{tpu_custom_call.1} parent=1 // pred_fallthru
      _
    // Predicated region
    $region38: #{tpu_custom_call.1} parent=1 // pred_check
      _
    $region39: #{tpu_custom_call.1} parent=1 // pred_check_branch
      %530 = sbr.rel (0) target = $region41
    $region40: #{tpu_custom_call.1} parent=1 // pred_region
      %531 = dma.done [#allocation4], 256
    $region41: #{tpu_custom_call.1} parent=1 // pred_fallthru
      _
    %532 = vsyncpa [#allocation3], 1
    %533 = vsyncpa [#allocation6], 1
    %534 = vsyncpa [#allocation4], 1

</llo_original>
